<compile_context>
chip_gen: v7x
topology: tpu7x:2x2x1
jax: 0.10.0
libtpu: 0.0.40
codegen_flags: <defaults>
</compile_context>

<pallas_src>
import numpy as np
import jax
import jax.numpy as jnp
from jax.experimental import pallas as pl
from jax.experimental.pallas import tpu as pltpu

HIDDEN_SIZE = 512          # LSTMCell hidden_size (fixed in the PyTorch module)
N_TOKENS_PER_CLASS = 20    # fixed in the PyTorch module
NUM_LAYERS = 3


# ---------------------------------------------------------------------------
# Fused kernel: normalize(dim=2) -> max over seq -> x @ [W1 | W2.T] + [b1 | b2[:tpc]]
# ---------------------------------------------------------------------------
def _fused_kernel(emb_ref, w_ref, b_ref, out_ref):
    # emb_ref: (B, S, D) f32; w_ref: (D, K) f32; b_ref: (1, K) f32; out_ref: (B, K) f32
    x = emb_ref[...]
    sumsq = jnp.sum(x * x, axis=-1, keepdims=True)            # (B, S, 1)  cross-lane (XLU)
    # F.normalize(x, p=2, dim=2, eps=1e-12) == x * rsqrt(max(sumsq, 1e-24))
    inv = jax.lax.rsqrt(jnp.maximum(sumsq, 1e-24))            # EUP rsqrt, no VPU divide
    xn = x * inv
    xm = jnp.max(xn, axis=1)                                  # (B, D)  max over sequence
    out_ref[...] = (
        jnp.dot(xm, w_ref[...], preferred_element_type=jnp.float32) + b_ref[...]
    )


def fused_forward(emb, w_cat, b_cat):
    """emb: (B, S, D) f32; w_cat: (D, K); b_cat: (1, K) -> (B, K) f32."""
    B, S, D = emb.shape
    K = w_cat.shape[1]
    return pl.pallas_call(
        _fused_kernel,
        out_shape=jax.ShapeDtypeStruct((B, K), jnp.float32),
        grid_spec=pltpu.PrefetchScalarGridSpec(
            num_scalar_prefetch=0,
            grid=(1,),
            in_specs=[
                pl.BlockSpec((B, S, D), lambda i: (0, 0, 0)),
                pl.BlockSpec((D, K), lambda i: (0, 0)),
                pl.BlockSpec((1, K), lambda i: (0, 0)),
            ],
            out_specs=pl.BlockSpec((B, K), lambda i: (0, 0)),
        ),
        compiler_params=pltpu.CompilerParams(
            dimension_semantics=("arbitrary",)),
    )(emb, w_cat, b_cat)


# ---------------------------------------------------------------------------
# Parameter init (deterministic, mirrors the PyTorch shapes / init recipe)
# ---------------------------------------------------------------------------
def init_params(key, article_shape, n_classes):
    vocab, emb_dim = article_shape
    assert emb_dim == HIDDEN_SIZE, "cell input dim must equal hidden_size=512"
    n_cls = int(np.ceil(n_classes * 1.0 / N_TOKENS_PER_CLASS))
    # b2[label_W2] with label_W2 in [0, tpc) requires n_cls >= tpc (as in PyTorch)
    assert n_cls >= N_TOKENS_PER_CLASS, "b2[label_W2] indexing requires n_classes >= 381"
    keys = jax.random.split(key, 1 + 2 * NUM_LAYERS)
    emb_table = jax.random.normal(keys[0], (vocab, emb_dim), jnp.float32)  # nn.Embedding ~N(0,1)
    cells = []
    for i in range(NUM_LAYERS):
        W1 = jax.random.uniform(keys[1 + 2 * i], (HIDDEN_SIZE, n_cls),
                                jnp.float32, minval=-0.1, maxval=0.1)
        b1 = jnp.zeros((n_cls,), jnp.float32)
        W2 = jax.random.uniform(keys[2 + 2 * i], (N_TOKENS_PER_CLASS, HIDDEN_SIZE),
                                jnp.float32, minval=-0.1, maxval=0.1)
        b2 = jnp.zeros((n_cls,), jnp.float32)
        cells.append((W1, b1, W2, b2))
    return emb_table, cells


def prepare_cells(cells, tpc=N_TOKENS_PER_CLASS):
    """Build compact per-cell weights ONCE (hoisted out of the forward trace)."""
    prepared = []
    for (W1, b1, W2, b2) in cells:
        w_cat = jnp.concatenate([W1, W2.T], axis=1)                 # (D, n_cls + tpc)
        b_cat = jnp.concatenate([b1, b2[:tpc]]).reshape(1, -1)      # (1, n_cls + tpc)
        prepared.append((w_cat, b_cat))
    return prepared


# ---------------------------------------------------------------------------
# Full model forward
# ---------------------------------------------------------------------------
def lstm_model_forward(inputs, emb_table, prepared_cells, n_classes,
                       tpc=N_TOKENS_PER_CLASS):
    n_cls = int(np.ceil(n_classes * 1.0 / tpc))
    idx = inputs[0]                         # (B, S) token ids
    x_emb = emb_table[idx]                  # (B, S, D) embedding gather (glue)

    # Only the LAST cell's output survives the PyTorch loop -> evaluate just it.
    w_cat, b_cat = prepared_cells[-1]
    small = fused_forward(x_emb, w_cat, b_cat)          # (B, n_cls + tpc)

    # Expand compact result to (B, T): out[:, c*tpc+t] = a[:, c] + b[:, t]
    a = small[:, :n_cls]                                # x@W1 + b1        (B, n_cls)
    b = small[:, n_cls:]                                # x@W2.T + b2[:tpc] (B, tpc)
    B = small.shape[0]
    out_full = (a[:, :, None] + b[:, None, :]).reshape(B, n_cls * tpc)   # (B, T)
    return out_full[:, :n_classes]


# ---------------------------------------------------------------------------
# Host-side float64 reference (mirrors the PyTorch math exactly)
# ---------------------------------------------------------------------------
def _reference_forward(inputs, emb_table, cells, n_classes, tpc=N_TOKENS_PER_CLASS):
    idx = np.asarray(inputs[0])
    emb = np.asarray(emb_table, np.float64)[idx]                    # (B, S, D)
    norm = np.sqrt(np.sum(emb * emb, axis=-1, keepdims=True))
    xn = emb / np.maximum(norm, 1e-12)
    x = xn.max(axis=1)                                              # (B, D)
    W1, b1, W2, b2 = [np.asarray(t, np.float64) for t in cells[-1]]
    n_cls = W1.shape[1]
    T = n_cls * tpc
    labels = np.arange(T)
    label_W2 = labels % tpc
    label_b1 = np.repeat(x @ W1 + b1, tpc, axis=1)                  # repeat_interleave
    label_b2 = x @ W2[label_W2].T + b2[label_W2][None, :]
    return (label_b1 + label_b2)[:, :n_classes]


if __name__ == "__main__":
    key = jax.random.PRNGKey(0)
    n_classes = 400                       # -> n_classes_cell = 20, n_tokens_actual = 400
    article_shape = (50, HIDDEN_SIZE)     # (vocab, embedding_dim); emb dim must be 512
    B, S = 2, 8

    k_params, k_data = jax.random.split(key)
    emb_table, cells = init_params(k_params, article_shape, n_classes)
    prepared_cells = prepare_cells(cells)                 # hoisted, built once
    inputs = jax.random.randint(k_data, (1, B, S), 0, article_shape[0], dtype=jnp.int32)

    out = lstm_model_forward(inputs, emb_table, prepared_cells, n_classes)
    out = jax.block_until_ready(out)

    assert out.shape == (B, n_classes) and out.dtype == jnp.float32
    ref = _reference_forward(inputs, emb_table, cells, n_classes)
    assert np.all(np.isfinite(np.asarray(out)))
    np.testing.assert_allclose(np.asarray(out, np.float64), ref, rtol=2e-2, atol=2e-2)
    print("KERNEL_OK")
</pallas_src>

<mosaic_0001>
module attributes {stable_mosaic.version = 11 : i64} {
  func.func @_fused_kernel(%arg0: i32, %arg1: memref<2x8x512xf32, #tpu.memory_space<vmem>>, %arg2: memref<512x40xf32, #tpu.memory_space<vmem>>, %arg3: memref<1x40xf32, #tpu.memory_space<vmem>>, %arg4: memref<2x40xf32, #tpu.memory_space<vmem>>) attributes {dimension_semantics = [#tpu.dimension_semantics<arbitrary>], iteration_bounds = array<i64: 1>, scalar_prefetch = 0 : i64, scratch_operands = 0 : i64, tpu.core_type = #tpu.core_type<tc>, window_params = [{pipeline_mode = #tpu.pipeline_mode<synchronous>, transform_indices = @transform_0, window_bounds = array<i64: 2, 8, 512>}, {pipeline_mode = #tpu.pipeline_mode<synchronous>, transform_indices = @transform_1, window_bounds = array<i64: 512, 40>}, {pipeline_mode = #tpu.pipeline_mode<synchronous>, transform_indices = @transform_2, window_bounds = array<i64: 1, 40>}, {pipeline_mode = #tpu.pipeline_mode<synchronous>, transform_indices = @transform_3, window_bounds = array<i64: 2, 40>}]} {
    %c0 = arith.constant 0 : index
    %c0_0 = arith.constant 0 : index
    %c0_1 = arith.constant 0 : index
    %0 = vector.load %arg1[%c0, %c0_0, %c0_1] : memref<2x8x512xf32, #tpu.memory_space<vmem>>, vector<2x8x512xf32>
    %1 = arith.mulf %0, %0 : vector<2x8x512xf32>
    %cst = arith.constant dense<0.000000e+00> : vector<2x8xf32>
    %2 = vector.multi_reduction <add>, %1, %cst [2] : vector<2x8x512xf32> to vector<2x8xf32>
    %3 = vector.shape_cast %2 : vector<2x8xf32> to vector<2x8x1xf32>
    %cst_2 = arith.constant 1.000000e-24 : f32
    %4 = vector.broadcast %cst_2 : f32 to vector<2x8x1xf32>
    %5 = arith.maximumf %3, %4 : vector<2x8x1xf32>
    %6 = math.rsqrt %5 : vector<2x8x1xf32>
    %7 = vector.broadcast %6 : vector<2x8x1xf32> to vector<2x8x512xf32>
    %8 = arith.mulf %0, %7 : vector<2x8x512xf32>
    %cst_3 = arith.constant dense<0xFF800000> : vector<2x512xf32>
    %9 = vector.multi_reduction <maximumf>, %8, %cst_3 [1] : vector<2x8x512xf32> to vector<2x512xf32>
    %c0_4 = arith.constant 0 : index
    %c0_5 = arith.constant 0 : index
    %10 = vector.load %arg2[%c0_4, %c0_5] : memref<512x40xf32, #tpu.memory_space<vmem>>, vector<512x40xf32>
    %cst_6 = arith.constant dense<0.000000e+00> : vector<2x40xf32>
    %11 = tpu.matmul %9, %10, %cst_6 {dimension_numbers = #tpu.dot_dimension_numbers<[1], [0], [0], [1], [0, 0, 1, 1], [], []>} : vector<2x512xf32>, vector<512x40xf32>, vector<2x40xf32> -> vector<2x40xf32>
    %c0_7 = arith.constant 0 : index
    %c0_8 = arith.constant 0 : index
    %12 = vector.load %arg3[%c0_7, %c0_8] : memref<1x40xf32, #tpu.memory_space<vmem>>, vector<1x40xf32>
    %13 = vector.broadcast %12 : vector<1x40xf32> to vector<2x40xf32>
    %14 = arith.addf %11, %13 : vector<2x40xf32>
    %c0_9 = arith.constant 0 : index
    %c0_10 = arith.constant 0 : index
    %15 = vector.load %arg4[%c0_9, %c0_10] : memref<2x40xf32, #tpu.memory_space<vmem>>, vector<2x40xf32>
    tpu.vector_store %arg4[%c0_9, %c0_10], %14 {strides = array<i32>} : memref<2x40xf32, #tpu.memory_space<vmem>>, vector<2x40xf32>,
    return
  }
  func.func @transform_0(%arg0: i32) -> (i32, i32, i32) {
    %c0_i32 = arith.constant 0 : i32
    %c0_i32_0 = arith.constant 0 : i32
    %c0_i32_1 = arith.constant 0 : i32
    %c0_i32_2 = arith.constant 0 : i32
    return %c0_i32, %c0_i32_0, %c0_i32_1 : i32, i32, i32
  }
  func.func @transform_1(%arg0: i32) -> (i32, i32) {
    %c0_i32 = arith.constant 0 : i32
    %c0_i32_0 = arith.constant 0 : i32
    %c0_i32_1 = arith.constant 0 : i32
    return %c0_i32, %c0_i32_0 : i32, i32
  }
  func.func @transform_2(%arg0: i32) -> (i32, i32) {
    %c0_i32 = arith.constant 0 : i32
    %c0_i32_0 = arith.constant 0 : i32
    %c0_i32_1 = arith.constant 0 : i32
    return %c0_i32, %c0_i32_0 : i32, i32
  }
  func.func @transform_3(%arg0: i32) -> (i32, i32) {
    %c0_i32 = arith.constant 0 : i32
    %c0_i32_0 = arith.constant 0 : i32
    %c0_i32_1 = arith.constant 0 : i32
    return %c0_i32, %c0_i32_0 : i32, i32
  }
}

</mosaic_0001>

<llo_original>
// kernel: tpu_custom_call.1
$region0: #{tpu_custom_call.1}
  #allocation0 [shape = 'u32[]', space=smem, size = 0x4, offset = 0x4, fixed_abs, tag = 'smem constant byte address 0x4 - core index']
  #allocation1 [shape = 'u32[144,128]{1,0:T(1,128)}', space=vmem, size = 0x12000, scoped, tag = 'internal scratch']
  %s0 = inlined_call_operand.vmem [shape: f32[2,8,512], index: 0, kind: input, shape index: {}]
  %s1 = inlined_call_operand.vmem [shape: f32[512,40], index: 1, kind: input, shape index: {}]
  %s2 = inlined_call_operand.vmem [shape: f32[1,40], index: 2, kind: input, shape index: {}]
  %s3 = inlined_call_operand.hbm [shape: f32[2,40], index: 3, kind: output, shape index: {}]
  %s4 = sld [smem:[#allocation0]]
  $region22: #{tpu_custom_call.1} parent=0
    _
  %s6 = ssub.s32 1, %s4
  %s7 = scalar_select 0, %s6, %s4
  $region1: #{tpu_custom_call.1} parent=0
    #allocation2 [shape = 'u8[1024]{0}', space=vmem, size = 0x400, scoped, tag = 'output window, operand 0, single buffered']
    #allocation3 [shape = 's32[1]{0}', space=sflag, size = 0x4, scoped, tag = 'scoped memory for tpu_custom_call.1']
    %8 = vsyncpa [#allocation3], 0
    // Predicated region
    $region2: #{tpu_custom_call.1} parent=1 // pred_check
      _
    $region3: #{tpu_custom_call.1} parent=1 // pred_check_branch
      %10 = sbr.rel (0) target = $region5
    $region4: #{tpu_custom_call.1} parent=1 // pred_region
      _
    $region5: #{tpu_custom_call.1} parent=1 // pred_fallthru
      _
    // Predicated region
    $region6: #{tpu_custom_call.1} parent=1 // pred_check
      _
    $region7: #{tpu_custom_call.1} parent=1 // pred_check_branch
      %12 = sbr.rel (0) target = $region9
    $region8: #{tpu_custom_call.1} parent=1 // pred_region
      _
    $region9: #{tpu_custom_call.1} parent=1 // pred_fallthru
      _
    // Predicated region
    $region10: #{tpu_custom_call.1} parent=1 // pred_check
      _
    $region11: #{tpu_custom_call.1} parent=1 // pred_check_branch
      %14 = sbr.rel (0) target = $region13
    $region12: #{tpu_custom_call.1} parent=1 // pred_region
      _
    $region13: #{tpu_custom_call.1} parent=1 // pred_fallthru
      _
    %v15 = vld [vmem:[%s0] sm:$0xff]
    %v16 = vld [vmem:[%s0 + $0x8] sm:$0xff]
    %v17 = vld [vmem:[%s0 + $0x10] sm:$0xff]
    %v18 = vld [vmem:[%s0 + $0x18] sm:$0xff]
    %v19 = vld [vmem:[%s0 + $0x20] sm:$0xff]
    %v20 = vld [vmem:[%s0 + $0x28] sm:$0xff]
    %v21 = vld [vmem:[%s0 + $0x30] sm:$0xff]
    %v22 = vld [vmem:[%s0 + $0x38] sm:$0xff]
    %v23 = vmul.f32 %v15, %v15
    %v24 = vmul.f32 %v16, %v16
    %v25 = vmul.f32 %v17, %v17
    %v26 = vmul.f32 %v18, %v18
    %v27 = vmul.f32 %v19, %v19
    %v28 = vmul.f32 %v20, %v20
    %v29 = vmul.f32 %v21, %v21
    %v30 = vmul.f32 %v22, %v22
    %v31 = vadd.f32 %v23, %v24
    %v32 = vadd.f32 %v31, %v25
    %v33 = vadd.f32 %v32, %v26
    %34 = vadd.xlane.f32.xlu0 %v33
    %v35 = vpop.xlane.xlu0 %34
    %v36 = vadd.f32 %v27, %v28
    %v37 = vadd.f32 %v36, %v29
    %v38 = vadd.f32 %v37, %v30
    %39 = vadd.xlane.f32.xlu0 %v38
    %v40 = vpop.xlane.xlu0 %39
    %v41 = vmax.f32 %v35, 1e-24
    %v42 = vmax.f32 %v40, 1e-24
    %v43 = vrsqrt.pop %v41
    %v44 = vrsqrt.pop %v42
    %v45 = vmul.f32 %v15, %v43
    %v46 = vmul.f32 %v16, %v43
    %v47 = vmul.f32 %v17, %v43
    %v48 = vmul.f32 %v18, %v43
    %v49 = vmul.f32 %v19, %v44
    %v50 = vmul.f32 %v20, %v44
    %v51 = vmul.f32 %v21, %v44
    %v52 = vmul.f32 %v22, %v44
    %v53 = vrot.slane %v45, 4
    %v54 = vmax.f32 %v45, %v53
    %v55 = vrot.slane %v54, 2
    %v56 = vmax.f32 %v54, %v55
    %v57 = vrot.slane %v56, 1
    %v58 = vmax.f32 %v56, %v57
    %v59 = vrot.slane %v46, 4
    %v60 = vmax.f32 %v46, %v59
    %v61 = vrot.slane %v60, 2
    %v62 = vmax.f32 %v60, %v61
    %v63 = vrot.slane %v62, 1
    %v64 = vmax.f32 %v62, %v63
    %v65 = vrot.slane %v47, 4
    %v66 = vmax.f32 %v47, %v65
    %v67 = vrot.slane %v66, 2
    %v68 = vmax.f32 %v66, %v67
    %v69 = vrot.slane %v68, 1
    %v70 = vmax.f32 %v68, %v69
    %v71 = vrot.slane %v48, 4
    %v72 = vmax.f32 %v48, %v71
    %v73 = vrot.slane %v72, 2
    %v74 = vmax.f32 %v72, %v73
    %v75 = vrot.slane %v74, 1
    %v76 = vmax.f32 %v74, %v75
    %v77 = vrot.slane %v49, 4
    %v78 = vmax.f32 %v49, %v77
    %v79 = vrot.slane %v78, 2
    %v80 = vmax.f32 %v78, %v79
    %v81 = vrot.slane %v80, 1
    %v82 = vmax.f32 %v80, %v81
    %v83 = vrot.slane %v50, 4
    %v84 = vmax.f32 %v50, %v83
    %v85 = vrot.slane %v84, 2
    %v86 = vmax.f32 %v84, %v85
    %v87 = vrot.slane %v86, 1
    %v88 = vmax.f32 %v86, %v87
    %v89 = vrot.slane %v51, 4
    %v90 = vmax.f32 %v51, %v89
    %v91 = vrot.slane %v90, 2
    %v92 = vmax.f32 %v90, %v91
    %v93 = vrot.slane %v92, 1
    %v94 = vmax.f32 %v92, %v93
    %v95 = vrot.slane %v52, 4
    %v96 = vmax.f32 %v52, %v95
    %v97 = vrot.slane %v96, 2
    %v98 = vmax.f32 %v96, %v97
    %v99 = vrot.slane %v98, 1
    %v100 = vmax.f32 %v98, %v99
    %v101 = vld [vmem:[%s1] sm:$0xff]
    %v102 = vld [vmem:[%s1 + $0x8] sm:$0xff]
    %v103 = vld [vmem:[%s1 + $0x10] sm:$0xff]
    %v104 = vld [vmem:[%s1 + $0x18] sm:$0xff]
    %v105 = vld [vmem:[%s1 + $0x20] sm:$0xff]
    %v106 = vld [vmem:[%s1 + $0x28] sm:$0xff]
    %v107 = vld [vmem:[%s1 + $0x30] sm:$0xff]
    %v108 = vld [vmem:[%s1 + $0x38] sm:$0xff]
    %v109 = vld [vmem:[%s1 + $0x40] sm:$0xff]
    %v110 = vld [vmem:[%s1 + $0x48] sm:$0xff]
    %v111 = vld [vmem:[%s1 + $0x50] sm:$0xff]
    %v112 = vld [vmem:[%s1 + $0x58] sm:$0xff]
    %v113 = vld [vmem:[%s1 + $0x60] sm:$0xff]
    %v114 = vld [vmem:[%s1 + $0x68] sm:$0xff]
    %v115 = vld [vmem:[%s1 + $0x70] sm:$0xff]
    %v116 = vld [vmem:[%s1 + $0x78] sm:$0xff]
    %v117 = vld [vmem:[%s1 + $0x80] sm:$0xff]
    %v118 = vld [vmem:[%s1 + $0x88] sm:$0xff]
    %v119 = vld [vmem:[%s1 + $0x90] sm:$0xff]
    %v120 = vld [vmem:[%s1 + $0x98] sm:$0xff]
    %v121 = vld [vmem:[%s1 + $0xa0] sm:$0xff]
    %v122 = vld [vmem:[%s1 + $0xa8] sm:$0xff]
    %v123 = vld [vmem:[%s1 + $0xb0] sm:$0xff]
    %v124 = vld [vmem:[%s1 + $0xb8] sm:$0xff]
    %v125 = vld [vmem:[%s1 + $0xc0] sm:$0xff]
    %v126 = vld [vmem:[%s1 + $0xc8] sm:$0xff]
    %v127 = vld [vmem:[%s1 + $0xd0] sm:$0xff]
    %v128 = vld [vmem:[%s1 + $0xd8] sm:$0xff]
    %v129 = vld [vmem:[%s1 + $0xe0] sm:$0xff]
    %v130 = vld [vmem:[%s1 + $0xe8] sm:$0xff]
    %v131 = vld [vmem:[%s1 + $0xf0] sm:$0xff]
    %v132 = vld [vmem:[%s1 + $0xf8] sm:$0xff]
    %v133 = vld [vmem:[%s1 + $0x100] sm:$0xff]
    %v134 = vld [vmem:[%s1 + $0x108] sm:$0xff]
    %v135 = vld [vmem:[%s1 + $0x110] sm:$0xff]
    %v136 = vld [vmem:[%s1 + $0x118] sm:$0xff]
    %v137 = vld [vmem:[%s1 + $0x120] sm:$0xff]
    %v138 = vld [vmem:[%s1 + $0x128] sm:$0xff]
    %v139 = vld [vmem:[%s1 + $0x130] sm:$0xff]
    %v140 = vld [vmem:[%s1 + $0x138] sm:$0xff]
    %v141 = vld [vmem:[%s1 + $0x140] sm:$0xff]
    %v142 = vld [vmem:[%s1 + $0x148] sm:$0xff]
    %v143 = vld [vmem:[%s1 + $0x150] sm:$0xff]
    %v144 = vld [vmem:[%s1 + $0x158] sm:$0xff]
    %v145 = vld [vmem:[%s1 + $0x160] sm:$0xff]
    %v146 = vld [vmem:[%s1 + $0x168] sm:$0xff]
    %v147 = vld [vmem:[%s1 + $0x170] sm:$0xff]
    %v148 = vld [vmem:[%s1 + $0x178] sm:$0xff]
    %v149 = vld [vmem:[%s1 + $0x180] sm:$0xff]
    %v150 = vld [vmem:[%s1 + $0x188] sm:$0xff]
    %v151 = vld [vmem:[%s1 + $0x190] sm:$0xff]
    %v152 = vld [vmem:[%s1 + $0x198] sm:$0xff]
    %v153 = vld [vmem:[%s1 + $0x1a0] sm:$0xff]
    %v154 = vld [vmem:[%s1 + $0x1a8] sm:$0xff]
    %v155 = vld [vmem:[%s1 + $0x1b0] sm:$0xff]
    %v156 = vld [vmem:[%s1 + $0x1b8] sm:$0xff]
    %v157 = vld [vmem:[%s1 + $0x1c0] sm:$0xff]
    %v158 = vld [vmem:[%s1 + $0x1c8] sm:$0xff]
    %v159 = vld [vmem:[%s1 + $0x1d0] sm:$0xff]
    %v160 = vld [vmem:[%s1 + $0x1d8] sm:$0xff]
    %v161 = vld [vmem:[%s1 + $0x1e0] sm:$0xff]
    %v162 = vld [vmem:[%s1 + $0x1e8] sm:$0xff]
    %v163 = vld [vmem:[%s1 + $0x1f0] sm:$0xff]
    %v164 = vld [vmem:[%s1 + $0x1f8] sm:$0xff]
    %v165 = vld [vmem:[%s2] sm:$0x1]
    %v167 = vlaneseq
    %v168 = vshrl.u32 %v167, 7
    %v169 = vsub.s32 0, %v168
    %v170 = vrot.slane %v165, %v169
    %vm180 = vcmask 1041409
    %v181 = vsel %vm180, %v82, %v58
    %v182 = vsel %vm180, %v88, %v64
    %v183 = vsel %vm180, %v94, %v70
    %v184 = vsel %vm180, %v100, %v76
    %189 = vmatprep.subr.mxu0 0.0
    %190 = vmatpush1.msra.mxu0 %v101
    %191 = vmatprep.subr.mxu0 0.0
    %192 = vmatpush1.msra.mxu0 %v102
    %193 = vmatprep.subr.mxu0 0.0
    %194 = vmatpush1.msra.mxu0 %v103
    %195 = vmatprep.subr.mxu0 0.0
    %196 = vmatpush1.msra.mxu0 %v104
    %197 = vmatprep.subr.mxu0 0.0
    %198 = vmatpush1.msra.mxu0 %v105
    %199 = vmatprep.subr.mxu0 0.0
    %200 = vmatpush1.msra.mxu0 %v106
    %201 = vmatprep.subr.mxu0 0.0
    %202 = vmatpush1.msra.mxu0 %v107
    %203 = vmatprep.subr.mxu0 0.0
    %204 = vmatpush1.msra.mxu0 %v108
    %205 = vmatprep.subr.mxu0 0.0
    %206 = vmatpush1.msra.mxu0 %v109
    %207 = vmatprep.subr.mxu0 0.0
    %208 = vmatpush1.msra.mxu0 %v110
    %209 = vmatprep.subr.mxu0 0.0
    %210 = vmatpush1.msra.mxu0 %v111
    %211 = vmatprep.subr.mxu0 0.0
    %212 = vmatpush1.msra.mxu0 %v112
    %213 = vmatprep.subr.mxu0 0.0
    %214 = vmatpush1.msra.mxu0 %v113
    %215 = vmatprep.subr.mxu0 0.0
    %216 = vmatpush1.msra.mxu0 %v114
    %217 = vmatprep.subr.mxu0 0.0
    %218 = vmatpush1.msra.mxu0 %v115
    %219 = vmatprep.subr.mxu0 0.0
    %220 = vmatpush1.msra.mxu0 %v116
    %221 = vmatprep.subr.mxu0 0.0
    %222 = vmatpush1.msra.mxu0 %v117
    %223 = vmatprep.subr.mxu0 0.0
    %224 = vmatpush1.msra.mxu0 %v118
    %225 = vmatprep.subr.mxu0 0.0
    %226 = vmatpush1.msra.mxu0 %v119
    %227 = vmatprep.subr.mxu0 0.0
    %228 = vmatpush1.msra.mxu0 %v120
    %229 = vmatprep.subr.mxu0 0.0
    %230 = vmatpush1.msra.mxu0 %v121
    %231 = vmatprep.subr.mxu0 0.0
    %232 = vmatpush1.msra.mxu0 %v122
    %233 = vmatprep.subr.mxu0 0.0
    %234 = vmatpush1.msra.mxu0 %v123
    %235 = vmatprep.subr.mxu0 0.0
    %236 = vmatpush1.msra.mxu0 %v124
    %237 = vmatprep.subr.mxu0 0.0
    %238 = vmatpush1.msra.mxu0 %v125
    %239 = vmatprep.subr.mxu0 0.0
    %240 = vmatpush1.msra.mxu0 %v126
    %241 = vmatprep.subr.mxu0 0.0
    %242 = vmatpush1.msra.mxu0 %v127
    %243 = vmatprep.subr.mxu0 0.0
    %244 = vmatpush1.msra.mxu0 %v128
    %245 = vmatprep.subr.mxu0 0.0
    %246 = vmatpush1.msra.mxu0 %v129
    %247 = vmatprep.subr.mxu0 0.0
    %248 = vmatpush1.msra.mxu0 %v130
    %249 = vmatprep.subr.mxu0 0.0
    %250 = vmatpush1.msra.mxu0 %v131
    %251 = vmatprep.subr.mxu0 0.0
    %252 = vmatpush1.msra.mxu0 %v132
    %253 = vmatprep.mubr.f32.mxu0 %v182
    %254 = vmatmul.mubr.f32.gmra.mrb[0].mxu0 %v181
    %v255 = vpop.f32.mrb[0].mxu0
    %v256 = vadd.f32 %v170, %v255
    %v257 = vpop.f32.mrb[0].mxu0
    %258 = vdwg.mxu0
    %259 = vmatprep.subr.mxu0 0.0
    %260 = vmatpush1.msra.mxu0 %v133
    %261 = vmatprep.subr.mxu0 0.0
    %262 = vmatpush1.msra.mxu0 %v134
    %263 = vmatprep.subr.mxu0 0.0
    %264 = vmatpush1.msra.mxu0 %v135
    %265 = vmatprep.subr.mxu0 0.0
    %266 = vmatpush1.msra.mxu0 %v136
    %267 = vmatprep.subr.mxu0 0.0
    %268 = vmatpush1.msra.mxu0 %v137
    %269 = vmatprep.subr.mxu0 0.0
    %270 = vmatpush1.msra.mxu0 %v138
    %271 = vmatprep.subr.mxu0 0.0
    %272 = vmatpush1.msra.mxu0 %v139
    %273 = vmatprep.subr.mxu0 0.0
    %274 = vmatpush1.msra.mxu0 %v140
    %275 = vmatprep.subr.mxu0 0.0
    %276 = vmatpush1.msra.mxu0 %v141
    %277 = vmatprep.subr.mxu0 0.0
    %278 = vmatpush1.msra.mxu0 %v142
    %279 = vmatprep.subr.mxu0 0.0
    %280 = vmatpush1.msra.mxu0 %v143
    %281 = vmatprep.subr.mxu0 0.0
    %282 = vmatpush1.msra.mxu0 %v144
    %283 = vmatprep.subr.mxu0 0.0
    %284 = vmatpush1.msra.mxu0 %v145
    %285 = vmatprep.subr.mxu0 0.0
    %286 = vmatpush1.msra.mxu0 %v146
    %287 = vmatprep.subr.mxu0 0.0
    %288 = vmatpush1.msra.mxu0 %v147
    %289 = vmatprep.subr.mxu0 0.0
    %290 = vmatpush1.msra.mxu0 %v148
    %291 = vmatprep.subr.mxu0 0.0
    %292 = vmatpush1.msra.mxu0 %v149
    %293 = vmatprep.subr.mxu0 0.0
    %294 = vmatpush1.msra.mxu0 %v150
    %295 = vmatprep.subr.mxu0 0.0
    %296 = vmatpush1.msra.mxu0 %v151
    %297 = vmatprep.subr.mxu0 0.0
    %298 = vmatpush1.msra.mxu0 %v152
    %299 = vmatprep.subr.mxu0 0.0
    %300 = vmatpush1.msra.mxu0 %v153
    %301 = vmatprep.subr.mxu0 0.0
    %302 = vmatpush1.msra.mxu0 %v154
    %303 = vmatprep.subr.mxu0 0.0
    %304 = vmatpush1.msra.mxu0 %v155
    %305 = vmatprep.subr.mxu0 0.0
    %306 = vmatpush1.msra.mxu0 %v156
    %307 = vmatprep.subr.mxu0 0.0
    %308 = vmatpush1.msra.mxu0 %v157
    %309 = vmatprep.subr.mxu0 0.0
    %310 = vmatpush1.msra.mxu0 %v158
    %311 = vmatprep.subr.mxu0 0.0
    %312 = vmatpush1.msra.mxu0 %v159
    %313 = vmatprep.subr.mxu0 0.0
    %314 = vmatpush1.msra.mxu0 %v160
    %315 = vmatprep.subr.mxu0 0.0
    %316 = vmatpush1.msra.mxu0 %v161
    %317 = vmatprep.subr.mxu0 0.0
    %318 = vmatpush1.msra.mxu0 %v162
    %319 = vmatprep.subr.mxu0 0.0
    %320 = vmatpush1.msra.mxu0 %v163
    %321 = vmatprep.subr.mxu0 0.0
    %322 = vmatpush1.msra.mxu0 %v164
    %323 = vmatprep.mubr.f32.mxu0 %v184
    %324 = vmatmul.mubr.f32.gmra.mrb[0].mxu0 %v183
    %v325 = vpop.f32.mrb[0].mxu0
    %v326 = vadd.f32 %v256, %v325
    %v327 = vpop.f32.mrb[0].mxu0
    %328 = vdwg.mxu0
    %vm329 = vcmask 320512
    %330 = vst.msk [vmem:[#allocation2] sm:$0x3] %vm329, %v326
    // Predicated region
    $region14: #{tpu_custom_call.1} parent=1 // pred_check
      _
    $region15: #{tpu_custom_call.1} parent=1 // pred_check_branch
      %332 = sbr.rel (0) target = $region17
    $region16: #{tpu_custom_call.1} parent=1 // pred_region
      %s334 = ssub.s32 32, 32
      %335 = vsyncadd [#allocation3], %s334
      %s337 = sshll.u32 [#allocation2], 4
      %s338 = int_to_ptr.vmem [resolvable:$true] %s337
      %340 = dma.vmem_to_hbm [thread:$0]  %s338, 32, %s3, [#allocation3]
    $region17: #{tpu_custom_call.1} parent=1 // pred_fallthru
      _
    // Predicated region
    $region18: #{tpu_custom_call.1} parent=1 // pred_check
      _
    $region19: #{tpu_custom_call.1} parent=1 // pred_check_branch
      %342 = sbr.rel (0) target = $region21
    $region20: #{tpu_custom_call.1} parent=1 // pred_region
      %343 = dma.done [#allocation3], 32
    $region21: #{tpu_custom_call.1} parent=1 // pred_fallthru
      _
    %344 = vsyncpa [#allocation3], 1

</llo_original>
